<compile_context>
chip_gen: v7x
topology: tpu7x:2x2x1
jax: 0.10.0
libtpu: 0.0.40
codegen_flags: <defaults>
</compile_context>

<pallas_src>
import math

import jax
import jax.numpy as jnp
from jax.experimental import pallas as pl
from jax.experimental.pallas import tpu as pltpu


def _round_up(x, m):
    return (x + m - 1) // m * m


# ------------------------------ Pallas kernel -------------------------------

def _v_encoder_kernel(x_ref, w_ref, t_ref, o_ref):
    """One row-tile of V_encoder: o = relu(x @ w' + shift').

    x_ref : (tm, F)  f32    activation tile (rows = batch*time), cast in-kernel
    w_ref : (F,  N)  bf16   folded weight  w' = w * bn_scale   (N padded to 128k)
    t_ref : (1,  N)  f32    folded shift   t' = b*bn_scale + bn_shift
    o_ref : (tm, N)  f32 or bf16
    """
    # In-kernel bf16 cast (VPU, hidden under DMA in this memory-bound kernel),
    # MXU matmul with f32 accumulation.
    x = x_ref[...].astype(jnp.bfloat16)
    y = jnp.dot(x, w_ref[...], preferred_element_type=jnp.float32)
    # Fused epilogue: folded bias/BN shift + ReLU.
    o_ref[...] = jnp.maximum(y + t_ref[...], 0.0).astype(o_ref.dtype)


# ------------------------------ host wrappers --------------------------------

def prepare_kernel_params(raw, eps=1e-5, weight_dtype=jnp.bfloat16):
    """One-time parameter preprocessing (hoisted out of the per-call path).

    Folds eval-mode BatchNorm (scale/shift from running stats) and the Linear
    bias into the weight columns and a single per-channel shift, in f32,
    before the one-time bf16 cast of the weight.
    """
    w = raw["w"]                      # (feature_size, emb_size), f32
    K, N = w.shape
    Np = _round_up(N, 128)            # lane-dense output stores

    scale = raw["bn_gamma"] / jnp.sqrt(raw["bn_var"] + eps)
    shift = raw["bn_beta"] - raw["bn_mean"] * scale

    w_fold = w * scale[None, :]                 # fold BN scale into weight (f32)
    t_fold = raw["b"] * scale + shift           # fold Linear bias into shift

    w_p = jnp.zeros((K, Np), jnp.float32).at[:, :N].set(w_fold)
    t_p = jnp.zeros((1, Np), jnp.float32).at[0, :N].set(t_fold)

    return {
        "w": w_p.astype(weight_dtype),          # cast once, not per call
        "shift": t_p,
        "feature_size": K, "emb_size": N, "n_pad": Np,
    }


def _vmem_bytes(tm, F, Np, out_bytes):
    """Rough double-buffered VMEM footprint of one grid step."""
    return (2 * tm * F * 4            # f32 activation tiles
            + 2 * tm * Np * out_bytes  # output tiles
            + 2 * F * Np * 2           # resident bf16 weight (double-buffered)
            + 2 * Np * 4)              # shift


def v_encoder_forward(params, src, *, block_m=512, out_dtype=jnp.float32,
                      vmem_budget=24 * 1024 * 1024):
    """V_encoder forward: Linear -> BatchNorm1d(eval) -> ReLU, one fused kernel.

    src: (B, S, feature_size) f32  ->  (B, S, emb_size) out_dtype
    """
    assert block_m % 16 == 0, "row tile must respect bf16 sublane packing"
    B, S, F = src.shape
    assert F == params["feature_size"]
    N, Np = params["emb_size"], params["n_pad"]
    M = B * S

    # Row tile: as large as allowed, multiple of 16.
    tm = min(block_m, _round_up(M, 16))
    # Keep >=2 grid steps for non-tiny inputs so the "parallel" axis can be
    # sharded across v7x's 2 TensorCores (no effect on v5e/v6e).
    if M > 32 and tm >= M:
        tm = _round_up(pl.cdiv(M, 2), 16)
    # Shrink tile if the double-buffered blocks would blow the VMEM budget
    # (relevant on v7x's smaller VMEM with large feature/emb sizes).
    out_bytes = jnp.dtype(out_dtype).itemsize
    while tm > 16 and _vmem_bytes(tm, F, Np, out_bytes) > vmem_budget:
        tm = max(16, _round_up(tm // 2, 16))

    grid_m = pl.cdiv(M, tm)           # ragged last tile handled by Pallas masking

    x2 = src.reshape(M, F)            # free bitcast; no host-side cast/pad

    out = pl.pallas_call(
        _v_encoder_kernel,
        out_shape=jax.ShapeDtypeStruct((M, Np), out_dtype),
        grid=(grid_m,),
        in_specs=[
            pl.BlockSpec((tm, F), lambda i: (i, 0)),   # activations: tiled over rows
            pl.BlockSpec((F, Np), lambda i: (0, 0)),   # folded weight: resident
            pl.BlockSpec((1, Np), lambda i: (0, 0)),   # folded shift
        ],
        out_specs=pl.BlockSpec((tm, Np), lambda i: (i, 0)),
        compiler_params=pltpu.CompilerParams(
            dimension_semantics=("parallel",)),        # megacore sharding on v7x
    )(x2, params["w"], params["shift"])

    if Np != N:
        out = out[:, :N]
    return out.reshape(B, S, N)


# ----------------------------- reference & init ------------------------------

def init_raw_params(key, feature_size, emb_size):
    """Synthetic V_encoder parameters matching the PyTorch init scheme."""
    k_w, k_m, k_v = jax.random.split(key, 3)
    gain = math.sqrt(2.0)                              # calculate_gain('relu')
    bound = gain * math.sqrt(6.0 / (feature_size + emb_size))  # xavier_uniform_
    w = jax.random.uniform(k_w, (feature_size, emb_size), jnp.float32, -bound, bound)
    return {
        "w": w,
        "b": jnp.zeros((emb_size,), jnp.float32),
        # BatchNorm1d: weight=1, bias=0 (per reference init). Running stats are
        # made non-trivial so the folded scale/shift path is actually exercised.
        "bn_gamma": jnp.ones((emb_size,), jnp.float32),
        "bn_beta": jnp.zeros((emb_size,), jnp.float32),
        "bn_mean": 0.1 * jax.random.normal(k_m, (emb_size,), jnp.float32),
        "bn_var": jax.random.uniform(k_v, (emb_size,), jnp.float32, 0.5, 1.5),
    }


def v_encoder_reference(raw, src, eps=1e-5):
    """Pure-JAX f32 reference of the PyTorch forward (eval-mode BN)."""
    y = src @ raw["w"] + raw["b"]
    y = (y - raw["bn_mean"]) / jnp.sqrt(raw["bn_var"] + eps) * raw["bn_gamma"] \
        + raw["bn_beta"]
    return jnp.maximum(y, 0.0)


# ----------------------------------- main ------------------------------------

if __name__ == "__main__":
    key = jax.random.PRNGKey(0)
    k_x, k_p = jax.random.split(key)

    # small shapes consistent with V_encoder: src is (B, S, feature_size)
    B, S, feature_size, emb_size = 2, 8, 256, 128
    src = jax.random.normal(k_x, (B, S, feature_size), jnp.float32)

    raw = init_raw_params(k_p, feature_size, emb_size)
    params = prepare_kernel_params(raw)

    out = v_encoder_forward(params, src)
    jax.block_until_ready(out)

    ref = v_encoder_reference(raw, src)
    assert out.shape == (B, S, emb_size), out.shape
    assert bool(jnp.all(jnp.isfinite(out)))
    # bf16 MXU inputs (with BN scale folded pre-cast) and f32 accumulation:
    # loose tolerance vs f32 reference.
    assert bool(jnp.allclose(out, ref, rtol=5e-2, atol=1e-1)), \
        float(jnp.max(jnp.abs(out - ref)))
    print("KERNEL_OK")
</pallas_src>

<mosaic_0001>
module attributes {stable_mosaic.version = 11 : i64} {
  func.func @_v_encoder_kernel(%arg0: i32, %arg1: memref<16x256xf32, #tpu.memory_space<vmem>>, %arg2: memref<256x128xbf16, #tpu.memory_space<vmem>>, %arg3: memref<1x128xf32, #tpu.memory_space<vmem>>, %arg4: memref<16x128xf32, #tpu.memory_space<vmem>>) attributes {dimension_semantics = [#tpu.dimension_semantics<parallel>], iteration_bounds = array<i64: 1>, scalar_prefetch = 0 : i64, scratch_operands = 0 : i64, tpu.core_type = #tpu.core_type<tc>, window_params = [{transform_indices = @transform_0, window_bounds = array<i64: 16, 256>}, {pipeline_mode = #tpu.pipeline_mode<synchronous>, transform_indices = @transform_1, window_bounds = array<i64: 256, 128>}, {pipeline_mode = #tpu.pipeline_mode<synchronous>, transform_indices = @transform_2, window_bounds = array<i64: 1, 128>}, {transform_indices = @transform_3, window_bounds = array<i64: 16, 128>}]} {
    %c0 = arith.constant 0 : index
    %c0_0 = arith.constant 0 : index
    %0 = vector.load %arg1[%c0, %c0_0] : memref<16x256xf32, #tpu.memory_space<vmem>>, vector<16x256xf32>
    %1 = arith.truncf %0 : vector<16x256xf32> to vector<16x256xbf16>
    %c0_1 = arith.constant 0 : index
    %c0_2 = arith.constant 0 : index
    %2 = vector.load %arg2[%c0_1, %c0_2] : memref<256x128xbf16, #tpu.memory_space<vmem>>, vector<256x128xbf16>
    %cst = arith.constant dense<0.000000e+00> : vector<16x128xf32>
    %3 = tpu.matmul %1, %2, %cst {dimension_numbers = #tpu.dot_dimension_numbers<[1], [0], [0], [1], [0, 0, 1, 1], [], []>} : vector<16x256xbf16>, vector<256x128xbf16>, vector<16x128xf32> -> vector<16x128xf32>
    %c0_3 = arith.constant 0 : index
    %c0_4 = arith.constant 0 : index
    %4 = vector.load %arg3[%c0_3, %c0_4] : memref<1x128xf32, #tpu.memory_space<vmem>>, vector<1x128xf32>
    %5 = vector.broadcast %4 : vector<1x128xf32> to vector<16x128xf32>
    %6 = arith.addf %3, %5 : vector<16x128xf32>
    %cst_5 = arith.constant 0.000000e+00 : f32
    %7 = vector.broadcast %cst_5 : f32 to vector<16x128xf32>
    %8 = arith.maximumf %6, %7 : vector<16x128xf32>
    %c0_6 = arith.constant 0 : index
    %c0_7 = arith.constant 0 : index
    %9 = vector.load %arg4[%c0_6, %c0_7] : memref<16x128xf32, #tpu.memory_space<vmem>>, vector<16x128xf32>
    tpu.vector_store %arg4[%c0_6, %c0_7], %8 {strides = array<i32>} : memref<16x128xf32, #tpu.memory_space<vmem>>, vector<16x128xf32>,
    return
  }
  func.func @transform_0(%arg0: i32) -> (i32, i32) {
    %c0_i32 = arith.constant 0 : i32
    %c0_i32_0 = arith.constant 0 : i32
    return %arg0, %c0_i32 : i32, i32
  }
  func.func @transform_1(%arg0: i32) -> (i32, i32) {
    %c0_i32 = arith.constant 0 : i32
    %c0_i32_0 = arith.constant 0 : i32
    %c0_i32_1 = arith.constant 0 : i32
    return %c0_i32, %c0_i32_0 : i32, i32
  }
  func.func @transform_2(%arg0: i32) -> (i32, i32) {
    %c0_i32 = arith.constant 0 : i32
    %c0_i32_0 = arith.constant 0 : i32
    %c0_i32_1 = arith.constant 0 : i32
    return %c0_i32, %c0_i32_0 : i32, i32
  }
  func.func @transform_3(%arg0: i32) -> (i32, i32) {
    %c0_i32 = arith.constant 0 : i32
    %c0_i32_0 = arith.constant 0 : i32
    return %arg0, %c0_i32 : i32, i32
  }
}

</mosaic_0001>

<llo_original>
// kernel: tpu_custom_call.1
$region0: #{tpu_custom_call.1}
  #allocation0 [shape = 'u32[]', space=smem, size = 0x4, offset = 0x4, fixed_abs, tag = 'smem constant byte address 0x4 - core index']
  #allocation1 [shape = 'u32[144,128]{1,0:T(1,128)}', space=vmem, size = 0x12000, scoped, tag = 'internal scratch']
  %s0 = inlined_call_operand.hbm [shape: f32[16,256], index: 0, kind: input, shape index: {}]
  %s1 = inlined_call_operand.hbm [shape: bf16[256,128], index: 1, kind: input, shape index: {}]
  %s2 = inlined_call_operand.vmem [shape: f32[1,128], index: 2, kind: input, shape index: {}]
  %s3 = inlined_call_operand.hbm [shape: f32[16,128], index: 3, kind: output, shape index: {}]
  %s4 = sld [smem:[#allocation0]]
  $region30: #{tpu_custom_call.1} parent=0
    _
  %s6 = ssub.s32 1, %s4
  %s7 = scalar_select 0, %s6, %s4
  $region1: #{tpu_custom_call.1} parent=0
    #allocation2 [shape = 'u8[16384]{0}', space=vmem, size = 0x4000, scoped, tag = 'input window, operand 0, single buffered']
    #allocation3 [shape = 's32[1]{0}', space=sflag, size = 0x4, scoped, tag = 'scoped memory for tpu_custom_call.1']
    #allocation4 [shape = 's32[1]{0}', space=sflag, size = 0x4, scoped, tag = 'scoped memory for tpu_custom_call.1']
    #allocation5 [shape = 'u8[65536]{0}', space=vmem, size = 0x10000, scoped, tag = 'input window, operand 1, single buffered']
    #allocation6 [shape = 's32[1]{0}', space=sflag, size = 0x4, scoped, tag = 'scoped memory for tpu_custom_call.1']
    #allocation7 [shape = 'u8[8192]{0}', space=vmem, size = 0x2000, scoped, tag = 'output window, operand 0, single buffered']
    %8 = vsyncpa [#allocation3], 0
    %9 = vsyncpa [#allocation6], 0
    %10 = vsyncpa [#allocation4], 0
    // Predicated region
    $region2: #{tpu_custom_call.1} parent=1 // pred_check
      _
    $region3: #{tpu_custom_call.1} parent=1 // pred_check_branch
      %12 = sbr.rel (0) target = $region5
    $region4: #{tpu_custom_call.1} parent=1 // pred_region
      %s14 = ssub.s32 512, 512
      %15 = vsyncadd [#allocation3], %s14
      %s16 = sshll.u32 [#allocation2], 4
      %s17 = int_to_ptr.vmem [resolvable:$true] %s16
      %22 = dma.hbm_to_vmem [thread:$0]  %s0, 512, %s17, [#allocation3], 256, 256, 16
    $region5: #{tpu_custom_call.1} parent=1 // pred_fallthru
      _
    // Predicated region
    $region6: #{tpu_custom_call.1} parent=1 // pred_check
      _
    $region7: #{tpu_custom_call.1} parent=1 // pred_check_branch
      %24 = sbr.rel (0) target = $region9
    $region8: #{tpu_custom_call.1} parent=1 // pred_region
      %s26 = ssub.s32 2048, 2048
      %27 = vsyncadd [#allocation6], %s26
      %s28 = sshll.u32 [#allocation5], 4
      %s29 = int_to_ptr.vmem [resolvable:$true] %s28
      %34 = dma.hbm_to_vmem [thread:$0]  %s1, 2048, %s29, [#allocation6], 64, 64, 4
    $region9: #{tpu_custom_call.1} parent=1 // pred_fallthru
      _
    // Predicated region
    $region10: #{tpu_custom_call.1} parent=1 // pred_check
      _
    $region11: #{tpu_custom_call.1} parent=1 // pred_check_branch
      %36 = sbr.rel (0) target = $region13
    $region12: #{tpu_custom_call.1} parent=1 // pred_region
      _
    $region13: #{tpu_custom_call.1} parent=1 // pred_fallthru
      _
    // Predicated region
    $region14: #{tpu_custom_call.1} parent=1 // pred_check
      _
    $region15: #{tpu_custom_call.1} parent=1 // pred_check_branch
      %38 = sbr.rel (0) target = $region17
    $region16: #{tpu_custom_call.1} parent=1 // pred_region
      %39 = dma.done [#allocation3], 512
    $region17: #{tpu_custom_call.1} parent=1 // pred_fallthru
      _
    // Predicated region
    $region18: #{tpu_custom_call.1} parent=1 // pred_check
      _
    $region19: #{tpu_custom_call.1} parent=1 // pred_check_branch
      %41 = sbr.rel (0) target = $region21
    $region20: #{tpu_custom_call.1} parent=1 // pred_region
      %42 = dma.done [#allocation6], 2048
    $region21: #{tpu_custom_call.1} parent=1 // pred_fallthru
      _
    %v44 = vld [vmem:[#allocation2] sm:$0xff]
    %v45 = vld [vmem:[#allocation2 + $0x8] sm:$0xff]
    %v46 = vld [vmem:[#allocation2 + $0x10] sm:$0xff]
    %v47 = vld [vmem:[#allocation2 + $0x18] sm:$0xff]
    %v48 = vpack.c.bf16 %v46, %v44
    %v49 = vpack.c.bf16 %v47, %v45
    %v50 = vld [vmem:[#allocation5] sm:$0xf]
    %v51 = vld [vmem:[#allocation5 + $0x4] sm:$0xf]
    %v52 = vld [vmem:[#allocation5 + $0x8] sm:$0xf]
    %v53 = vld [vmem:[#allocation5 + $0xc] sm:$0xf]
    %v54 = vld [vmem:[#allocation5 + $0x10] sm:$0xf]
    %v55 = vld [vmem:[#allocation5 + $0x14] sm:$0xf]
    %v56 = vld [vmem:[#allocation5 + $0x18] sm:$0xf]
    %v57 = vld [vmem:[#allocation5 + $0x1c] sm:$0xf]
    %v58 = vld [vmem:[#allocation5 + $0x20] sm:$0xf]
    %v59 = vld [vmem:[#allocation5 + $0x24] sm:$0xf]
    %v60 = vld [vmem:[#allocation5 + $0x28] sm:$0xf]
    %v61 = vld [vmem:[#allocation5 + $0x2c] sm:$0xf]
    %v62 = vld [vmem:[#allocation5 + $0x30] sm:$0xf]
    %v63 = vld [vmem:[#allocation5 + $0x34] sm:$0xf]
    %v64 = vld [vmem:[#allocation5 + $0x38] sm:$0xf]
    %v65 = vld [vmem:[#allocation5 + $0x3c] sm:$0xf]
    %v66 = vld [vmem:[#allocation5 + $0x40] sm:$0xf]
    %v67 = vld [vmem:[#allocation5 + $0x44] sm:$0xf]
    %v68 = vld [vmem:[#allocation5 + $0x48] sm:$0xf]
    %v69 = vld [vmem:[#allocation5 + $0x4c] sm:$0xf]
    %v70 = vld [vmem:[#allocation5 + $0x50] sm:$0xf]
    %v71 = vld [vmem:[#allocation5 + $0x54] sm:$0xf]
    %v72 = vld [vmem:[#allocation5 + $0x58] sm:$0xf]
    %v73 = vld [vmem:[#allocation5 + $0x5c] sm:$0xf]
    %v74 = vld [vmem:[#allocation5 + $0x60] sm:$0xf]
    %v75 = vld [vmem:[#allocation5 + $0x64] sm:$0xf]
    %v76 = vld [vmem:[#allocation5 + $0x68] sm:$0xf]
    %v77 = vld [vmem:[#allocation5 + $0x6c] sm:$0xf]
    %v78 = vld [vmem:[#allocation5 + $0x70] sm:$0xf]
    %v79 = vld [vmem:[#allocation5 + $0x74] sm:$0xf]
    %v80 = vld [vmem:[#allocation5 + $0x78] sm:$0xf]
    %v81 = vld [vmem:[#allocation5 + $0x7c] sm:$0xf]
    %v82 = vld [vmem:[%s2] sm:$0x1]
    %v84 = vlaneseq
    %v85 = vshrl.u32 %v84, 7
    %v86 = vsub.s32 0, %v85
    %v87 = vrot.slane %v82, %v86
    %v121 = vunpack.c.l.b16 %v50
    %v122 = vunpack.c.l.b16 %v51
    %v123 = vunpack.c.l.b16 %v52
    %v124 = vunpack.c.l.b16 %v53
    %v125 = vunpack.c.l.b16 %v54
    %v126 = vunpack.c.l.b16 %v55
    %v127 = vunpack.c.l.b16 %v56
    %v128 = vunpack.c.l.b16 %v57
    %v129 = vunpack.c.l.b16 %v58
    %v130 = vunpack.c.l.b16 %v59
    %v131 = vunpack.c.l.b16 %v60
    %v132 = vunpack.c.l.b16 %v61
    %v133 = vunpack.c.l.b16 %v62
    %v134 = vunpack.c.l.b16 %v63
    %v135 = vunpack.c.l.b16 %v64
    %v136 = vunpack.c.l.b16 %v65
    %v137 = vunpack.c.l.b16 %v66
    %v138 = vunpack.c.l.b16 %v67
    %v139 = vunpack.c.l.b16 %v68
    %v140 = vunpack.c.l.b16 %v69
    %v141 = vunpack.c.l.b16 %v70
    %v142 = vunpack.c.l.b16 %v71
    %v143 = vunpack.c.l.b16 %v72
    %v144 = vunpack.c.l.b16 %v73
    %v145 = vunpack.c.l.b16 %v74
    %v146 = vunpack.c.l.b16 %v75
    %v147 = vunpack.c.l.b16 %v76
    %v148 = vunpack.c.l.b16 %v77
    %v149 = vunpack.c.l.b16 %v78
    %v150 = vunpack.c.l.b16 %v79
    %v151 = vunpack.c.l.b16 %v80
    %v152 = vunpack.c.l.b16 %v81
    %v153 = vpack.c.b16 %v122, %v121
    %v154 = vpack.c.b16 %v124, %v123
    %v155 = vpack.c.b16 %v126, %v125
    %v156 = vpack.c.b16 %v128, %v127
    %v157 = vpack.c.b16 %v130, %v129
    %v158 = vpack.c.b16 %v132, %v131
    %v159 = vpack.c.b16 %v134, %v133
    %v160 = vpack.c.b16 %v136, %v135
    %v161 = vpack.c.b16 %v138, %v137
    %v162 = vpack.c.b16 %v140, %v139
    %v163 = vpack.c.b16 %v142, %v141
    %v164 = vpack.c.b16 %v144, %v143
    %v165 = vpack.c.b16 %v146, %v145
    %v166 = vpack.c.b16 %v148, %v147
    %v167 = vpack.c.b16 %v150, %v149
    %v168 = vpack.c.b16 %v152, %v151
    %185 = vmatprep.subr.bf16.mxu0 0
    %186 = vmatpush1.bf16.msra.mxu0 %v153
    %187 = vmatprep.subr.bf16.mxu0 0
    %188 = vmatpush1.bf16.msra.mxu0 %v154
    %189 = vmatprep.subr.bf16.mxu0 0
    %190 = vmatpush1.bf16.msra.mxu0 %v155
    %191 = vmatprep.subr.bf16.mxu0 0
    %192 = vmatpush1.bf16.msra.mxu0 %v156
    %193 = vmatprep.subr.bf16.mxu0 0
    %194 = vmatpush1.bf16.msra.mxu0 %v157
    %195 = vmatprep.subr.bf16.mxu0 0
    %196 = vmatpush1.bf16.msra.mxu0 %v158
    %197 = vmatprep.subr.bf16.mxu0 0
    %198 = vmatpush1.bf16.msra.mxu0 %v159
    %199 = vmatprep.subr.bf16.mxu0 0
    %200 = vmatpush1.bf16.msra.mxu0 %v160
    %201 = vmatprep.subr.bf16.mxu0 0
    %202 = vmatpush1.bf16.msra.mxu0 %v161
    %203 = vmatprep.subr.bf16.mxu0 0
    %204 = vmatpush1.bf16.msra.mxu0 %v162
    %205 = vmatprep.subr.bf16.mxu0 0
    %206 = vmatpush1.bf16.msra.mxu0 %v163
    %207 = vmatprep.subr.bf16.mxu0 0
    %208 = vmatpush1.bf16.msra.mxu0 %v164
    %209 = vmatprep.subr.bf16.mxu0 0
    %210 = vmatpush1.bf16.msra.mxu0 %v165
    %211 = vmatprep.subr.bf16.mxu0 0
    %212 = vmatpush1.bf16.msra.mxu0 %v166
    %213 = vmatprep.subr.bf16.mxu0 0
    %214 = vmatpush1.bf16.msra.mxu0 %v167
    %215 = vmatprep.subr.bf16.mxu0 0
    %216 = vmatpush1.bf16.msra.mxu0 %v168
    %217 = vmatprep.mubr.bf16.mxu0 %v49
    %218 = vmatmul.mubr.bf16.gmra.mrb[0].mxu0 %v48
    %v219 = vpop.f32.mrb[0].mxu0
    %v220 = vadd.f32 %v87, %v219
    %v221 = vpop.f32.mrb[0].mxu0
    %v222 = vpop.f32.mrb[0].mxu0
    %v223 = vadd.f32 %v87, %v222
    %v224 = vpop.f32.mrb[0].mxu0
    %225 = vdwg.mxu0
    %v226 = vmax.f32 %v220, 0.0
    %v227 = vmax.f32 %v223, 0.0
    %228 = vst [vmem:[#allocation7] sm:$0xff] %v226
    %229 = vst [vmem:[#allocation7 + $0x8] sm:$0xff] %v227
    // Predicated region
    $region22: #{tpu_custom_call.1} parent=1 // pred_check
      _
    $region23: #{tpu_custom_call.1} parent=1 // pred_check_branch
      %231 = sbr.rel (0) target = $region25
    $region24: #{tpu_custom_call.1} parent=1 // pred_region
      %s233 = ssub.s32 256, 256
      %234 = vsyncadd [#allocation4], %s233
      %s235 = sshll.u32 [#allocation7], 4
      %s236 = int_to_ptr.vmem [resolvable:$true] %s235
      %241 = dma.vmem_to_hbm [thread:$0]  %s236, 256, %s3, [#allocation4], 128, 128, 8
    $region25: #{tpu_custom_call.1} parent=1 // pred_fallthru
      _
    // Predicated region
    $region26: #{tpu_custom_call.1} parent=1 // pred_check
      _
    $region27: #{tpu_custom_call.1} parent=1 // pred_check_branch
      %243 = sbr.rel (0) target = $region29
    $region28: #{tpu_custom_call.1} parent=1 // pred_region
      %244 = dma.done [#allocation4], 256
    $region29: #{tpu_custom_call.1} parent=1 // pred_fallthru
      _
    %245 = vsyncpa [#allocation3], 1
    %246 = vsyncpa [#allocation6], 1
    %247 = vsyncpa [#allocation4], 1

</llo_original>
